<compile_context>
chip_gen: v5e
topology: v5e:2x2
jax: 0.10.0
libtpu: 0.0.40
codegen_flags: <defaults>
</compile_context>

<pallas_src>
import math

import jax
import jax.numpy as jnp
from jax.experimental import pallas as pl
from jax.experimental.pallas import tpu as pltpu


def _ru8(n: int) -> int:
    return ((n + 7) // 8) * 8


# ----------------------------- Pallas kernel ------------------------------- #
def _make_fused_lstm_kernel(num_layers: int, num_inputs: int, hidden: int,
                            kx: int, kbias: int, compute_dtype):
    """Fused multi-layer single-timestep LSTM kernel (all layers in one body)."""
    H = hidden

    def kernel(x_ref, h_ref, c_ref, w_ref, h_out_ref, c_out_ref, xh_ref):
        B = x_ref.shape[0]
        # One-time zero init of the packed [x | h | 1 | pad] scratch.  Load-bearing:
        # the matching packed-weight rows are zero, but 0 * uninitialized-NaN = NaN,
        # so every lane the contraction touches must be finite.  Costs one masked vst.
        xh_ref[...] = jnp.zeros(xh_ref.shape, xh_ref.dtype)
        # Constant-1 lane that multiplies the (b_ih + b_hh) row of the packed weight,
        # folding the bias add into the single MXU contraction.
        xh_ref[:, kbias:kbias + 1] = jnp.ones((B, 1), xh_ref.dtype)

        layer_in = x_ref[...].astype(compute_dtype)            # (B, num_inputs)
        for layer in range(num_layers):                        # static, fully unrolled
            d = num_inputs if layer == 0 else H
            # NOTE: for layer > 0 with num_inputs > H, lanes [H:num_inputs) still hold
            # layer-0's x; benign because those packed-weight rows are zero for layer>0.
            xh_ref[:, 0:d] = layer_in                           # input segment
            xh_ref[:, kx:kx + H] = h_ref[layer].astype(compute_dtype)   # hidden segment

            # Single fused MXU contraction per layer (bias folded in):
            #   gates = [x | h | 1] @ [W_ih^T ; W_hh^T ; b_ih+b_hh]   -> (B, 4H) f32
            gates = jnp.dot(xh_ref[...], w_ref[layer],
                            preferred_element_type=jnp.float32)

            # PyTorch gate order [i, f, g, o]; 4H == 128 here, so `gates` is one
            # lane-full vreg row and these are cheap static sub-vreg extracts.
            i = jax.nn.sigmoid(gates[:, 0 * H:1 * H])
            f = jax.nn.sigmoid(gates[:, 1 * H:2 * H])
            g = jnp.tanh(gates[:, 2 * H:3 * H])
            o = jax.nn.sigmoid(gates[:, 3 * H:4 * H])

            c_new = f * c_ref[layer] + i * g
            h_new = o * jnp.tanh(c_new)

            h_out_ref[layer, :, :] = h_new                      # aliased onto h0's buffer
            c_out_ref[layer, :, :] = c_new                      # aliased onto c0's buffer

            layer_in = h_new.astype(compute_dtype)              # feeds next layer (vregs)

    return kernel


# ------------------------- parameter init / packing ------------------------ #
def init_params(key, num_inputs, num_outputs, num_layers):
    """Deterministic init mirroring LSTMController.reset_parameters().

    Returns:
      raw:          per-layer (w_ih, w_hh, b_ih, b_hh), f32 (also used by the reference).
      state_biases: (lstm_h_bias, lstm_c_bias), each (L, 1, H).
    """
    H = num_outputs
    stdev = 5.0 / math.sqrt(num_inputs + num_outputs)
    raw = []
    for layer in range(num_layers):
        in_dim = num_inputs if layer == 0 else H
        key, k_ih, k_hh = jax.random.split(key, 3)
        w_ih = jax.random.uniform(k_ih, (4 * H, in_dim),
                                  minval=-stdev, maxval=stdev, dtype=jnp.float32)
        w_hh = jax.random.uniform(k_hh, (4 * H, H),
                                  minval=-stdev, maxval=stdev, dtype=jnp.float32)
        b_ih = jnp.zeros((4 * H,), jnp.float32)   # nn.init.constant_(p, 0)
        b_hh = jnp.zeros((4 * H,), jnp.float32)
        raw.append((w_ih, w_hh, b_ih, b_hh))

    key, k_h, k_c = jax.random.split(key, 3)
    lstm_h_bias = 0.05 * jax.random.normal(k_h, (num_layers, 1, H), dtype=jnp.float32)
    lstm_c_bias = 0.05 * jax.random.normal(k_c, (num_layers, 1, H), dtype=jnp.float32)
    return raw, (lstm_h_bias, lstm_c_bias)


def pack_params(raw_params, num_inputs, num_outputs, param_dtype=jnp.bfloat16):
    """Packs per-layer weights into one (L, K, 4H) slab for the kernel.

    Row layout (contraction dim K, 8-sublane aligned):
      [0 : in_dim)        <- W_ih^T
      [kx : kx + H)       <- W_hh^T
      [kbias]             <- b_ih + b_hh   (driven by a constant-1 lane in xh)
      everything else 0.
    """
    H = num_outputs
    kx = _ru8(max(num_inputs, H))
    kh = _ru8(H)
    kbias = kx + kh
    K = _ru8(kbias + 1)     # bias row + zero padding to 8 sublanes

    layers = []
    for layer, (w_ih, w_hh, b_ih, b_hh) in enumerate(raw_params):
        in_dim = num_inputs if layer == 0 else H
        w_packed = jnp.zeros((K, 4 * H), jnp.float32)
        w_packed = w_packed.at[0:in_dim, :].set(w_ih.T)
        w_packed = w_packed.at[kx:kx + H, :].set(w_hh.T)
        w_packed = w_packed.at[kbias, :].set(b_ih + b_hh)
        layers.append(w_packed)
    return jnp.stack(layers, axis=0).astype(param_dtype)      # (L, K, 4H)


def create_new_state(state_biases, batch_size):
    """LSTMController.create_new_state: repeat bias along batch dim."""
    h_bias, c_bias = state_biases
    h0 = jnp.repeat(h_bias, batch_size, axis=1)   # (L, B, H)
    c0 = jnp.repeat(c_bias, batch_size, axis=1)   # (L, B, H)
    return h0, c0


# ------------------------------ forward wrapper ----------------------------- #
@jax.jit
def lstm_controller_forward(x, prev_state, w_stacked):
    """Forward pass for x of shape (batch, num_inputs) (seq_len == 1)."""
    h0, c0 = prev_state                           # each (L, B, H) float32
    L, B, H = h0.shape
    num_inputs = x.shape[1]
    kx = _ru8(max(num_inputs, H))
    kh = _ru8(H)
    kbias = kx + kh
    K = w_stacked.shape[1]
    compute_dtype = w_stacked.dtype               # bf16 or f32 MXU operands

    vmem = pl.BlockSpec(memory_space=pltpu.MemorySpace.VMEM)
    kernel = _make_fused_lstm_kernel(L, num_inputs, H, kx, kbias, compute_dtype)

    h_new, c_new = pl.pallas_call(
        kernel,
        out_shape=(jax.ShapeDtypeStruct((L, B, H), jnp.float32),
                   jax.ShapeDtypeStruct((L, B, H), jnp.float32)),
        in_specs=[vmem, vmem, vmem, vmem],
        out_specs=(vmem, vmem),
        scratch_shapes=[pltpu.VMEM((B, K), compute_dtype)],    # packed [x | h | 1] buffer
        # Donate h0 -> h_new and c0 -> c_new: no per-step HBM alloc/copy of the state
        # when the controller is stepped inside a jitted rollout.
        input_output_aliases={1: 0, 2: 1},
    )(x, h0, c0, w_stacked)

    outp = h_new[L - 1]                           # == outp.squeeze(0) in PyTorch
    return outp, (h_new, c_new)


# --------------------------- pure-JAX reference ----------------------------- #
def _reference_forward(x, prev_state, raw_params):
    h_prev, c_prev = prev_state
    num_layers, _, H = h_prev.shape
    h_out, c_out = [], []
    layer_in = x
    for layer in range(num_layers):
        w_ih, w_hh, b_ih, b_hh = raw_params[layer]
        gates = layer_in @ w_ih.T + h_prev[layer] @ w_hh.T + b_ih + b_hh
        i = jax.nn.sigmoid(gates[:, 0 * H:1 * H])
        f = jax.nn.sigmoid(gates[:, 1 * H:2 * H])
        g = jnp.tanh(gates[:, 2 * H:3 * H])
        o = jax.nn.sigmoid(gates[:, 3 * H:4 * H])
        c_new = f * c_prev[layer] + i * g
        h_new = o * jnp.tanh(c_new)
        h_out.append(h_new)
        c_out.append(c_new)
        layer_in = h_new
    return layer_in, (jnp.stack(h_out, 0), jnp.stack(c_out, 0))


# --------------------------------- main ------------------------------------ #
if __name__ == "__main__":
    num_inputs = 32
    num_outputs = 32
    num_layers = 2
    batch = 2

    key = jax.random.PRNGKey(0)
    key, k_params, k_x = jax.random.split(key, 3)

    raw_params, state_biases = init_params(k_params, num_inputs, num_outputs, num_layers)
    prev_state = create_new_state(state_biases, batch)
    x = jax.random.normal(k_x, (batch, num_inputs), dtype=jnp.float32)

    ref_outp, (ref_h, ref_c) = _reference_forward(x, prev_state, raw_params)

    # --- f32-weight path: exact check of the kernel math against the reference ---
    w_f32 = pack_params(raw_params, num_inputs, num_outputs, param_dtype=jnp.float32)
    outp, (h_new, c_new) = lstm_controller_forward(x, prev_state, w_f32)
    jax.block_until_ready((outp, h_new, c_new))
    assert outp.shape == (batch, num_outputs)
    assert h_new.shape == (num_layers, batch, num_outputs)
    assert c_new.shape == (num_layers, batch, num_outputs)
    assert jnp.allclose(outp, ref_outp, atol=1e-5)
    assert jnp.allclose(h_new, ref_h, atol=1e-5)
    assert jnp.allclose(c_new, ref_c, atol=1e-5)

    # --- bf16-weight path (default for deployment; f32 accumulation + f32 gate math):
    #     halves the weight HBM fetch (biggest relative gain on v5e).  Looser tolerance
    #     is expected from bf16 quantization of weights/activations.
    w_bf16 = pack_params(raw_params, num_inputs, num_outputs, param_dtype=jnp.bfloat16)
    outp_b, (h_b, c_b) = lstm_controller_forward(x, prev_state, w_bf16)
    jax.block_until_ready((outp_b, h_b, c_b))
    assert jnp.allclose(outp_b, ref_outp, atol=3e-2)
    assert jnp.allclose(h_b, ref_h, atol=3e-2)
    assert jnp.allclose(c_b, ref_c, atol=3e-2)

    print("KERNEL_OK")
</pallas_src>

<mosaic_0001>
module attributes {stable_mosaic.version = 11 : i64} {
  func.func @kernel(%arg0: memref<2x32xf32, #tpu.memory_space<vmem>>, %arg1: memref<2x2x32xf32, #tpu.memory_space<vmem>>, %arg2: memref<2x2x32xf32, #tpu.memory_space<vmem>>, %arg3: memref<2x72x128xf32, #tpu.memory_space<vmem>>, %arg4: memref<2x2x32xf32, #tpu.memory_space<vmem>>, %arg5: memref<2x2x32xf32, #tpu.memory_space<vmem>>, %arg6: memref<2x72xf32, #tpu.memory_space<vmem>>) attributes {dimension_semantics = [], scalar_prefetch = 0 : i64, scratch_operands = 1 : i64, tpu.core_type = #tpu.core_type<tc>} {
    %cst = arith.constant 0.000000e+00 : f32
    %0 = vector.broadcast %cst : f32 to vector<2x72xf32>
    %c0 = arith.constant 0 : index
    %c0_0 = arith.constant 0 : index
    %1 = vector.load %arg6[%c0, %c0_0] : memref<2x72xf32, #tpu.memory_space<vmem>>, vector<2x72xf32>
    tpu.vector_store %arg6[%c0, %c0_0], %0 {strides = array<i32>} : memref<2x72xf32, #tpu.memory_space<vmem>>, vector<2x72xf32>,
    %cst_1 = arith.constant 1.000000e+00 : f32
    %2 = vector.broadcast %cst_1 : f32 to vector<2x1xf32>
    %c0_2 = arith.constant 0 : index
    %c64 = arith.constant 64 : index
    %3 = vector.load %arg6[%c0_2, %c64] : memref<2x72xf32, #tpu.memory_space<vmem>>, vector<2x1xf32>
    tpu.vector_store %arg6[%c0_2, %c64], %2 {strides = array<i32>} : memref<2x72xf32, #tpu.memory_space<vmem>>, vector<2x1xf32>,
    %c0_3 = arith.constant 0 : index
    %c0_4 = arith.constant 0 : index
    %4 = vector.load %arg0[%c0_3, %c0_4] : memref<2x32xf32, #tpu.memory_space<vmem>>, vector<2x32xf32>
    %c0_5 = arith.constant 0 : index
    %c0_6 = arith.constant 0 : index
    %5 = vector.load %arg6[%c0_5, %c0_6] : memref<2x72xf32, #tpu.memory_space<vmem>>, vector<2x32xf32>
    tpu.vector_store %arg6[%c0_5, %c0_6], %4 {strides = array<i32>} : memref<2x72xf32, #tpu.memory_space<vmem>>, vector<2x32xf32>,
    %c0_7 = arith.constant 0 : index
    %c0_8 = arith.constant 0 : index
    %c0_9 = arith.constant 0 : index
    %6 = vector.load %arg1[%c0_7, %c0_8, %c0_9] : memref<2x2x32xf32, #tpu.memory_space<vmem>>, vector<1x2x32xf32>
    %7 = vector.shape_cast %6 : vector<1x2x32xf32> to vector<2x32xf32>
    %c0_10 = arith.constant 0 : index
    %c32 = arith.constant 32 : index
    %8 = vector.load %arg6[%c0_10, %c32] : memref<2x72xf32, #tpu.memory_space<vmem>>, vector<2x32xf32>
    tpu.vector_store %arg6[%c0_10, %c32], %7 {strides = array<i32>} : memref<2x72xf32, #tpu.memory_space<vmem>>, vector<2x32xf32>,
    %c0_11 = arith.constant 0 : index
    %c0_12 = arith.constant 0 : index
    %9 = vector.load %arg6[%c0_11, %c0_12] : memref<2x72xf32, #tpu.memory_space<vmem>>, vector<2x72xf32>
    %c0_13 = arith.constant 0 : index
    %c0_14 = arith.constant 0 : index
    %c0_15 = arith.constant 0 : index
    %10 = vector.load %arg3[%c0_13, %c0_14, %c0_15] : memref<2x72x128xf32, #tpu.memory_space<vmem>>, vector<1x72x128xf32>
    %11 = vector.shape_cast %10 : vector<1x72x128xf32> to vector<72x128xf32>
    %cst_16 = arith.constant dense<0.000000e+00> : vector<2x128xf32>
    %12 = tpu.matmul %9, %11, %cst_16 {dimension_numbers = #tpu.dot_dimension_numbers<[1], [0], [0], [1], [0, 0, 1, 1], [], []>} : vector<2x72xf32>, vector<72x128xf32>, vector<2x128xf32> -> vector<2x128xf32>
    %13 = vector.extract_strided_slice %12 {offsets = [0, 0], sizes = [2, 32], strides = [1, 1]} : vector<2x128xf32> to vector<2x32xf32>
    %14 = arith.negf %13 : vector<2x32xf32>
    %15 = math.exp %14 : vector<2x32xf32>
    %cst_17 = arith.constant 1.000000e+00 : f32
    %16 = vector.broadcast %cst_17 : f32 to vector<2x32xf32>
    %17 = arith.addf %16, %15 : vector<2x32xf32>
    %18 = arith.divf %16, %17 : vector<2x32xf32>
    %19 = vector.extract_strided_slice %12 {offsets = [0, 32], sizes = [2, 32], strides = [1, 1]} : vector<2x128xf32> to vector<2x32xf32>
    %20 = arith.negf %19 : vector<2x32xf32>
    %21 = math.exp %20 : vector<2x32xf32>
    %cst_18 = arith.constant 1.000000e+00 : f32
    %22 = vector.broadcast %cst_18 : f32 to vector<2x32xf32>
    %23 = arith.addf %22, %21 : vector<2x32xf32>
    %24 = arith.divf %22, %23 : vector<2x32xf32>
    %25 = vector.extract_strided_slice %12 {offsets = [0, 64], sizes = [2, 32], strides = [1, 1]} : vector<2x128xf32> to vector<2x32xf32>
    %26 = math.tanh %25 : vector<2x32xf32>
    %27 = vector.extract_strided_slice %12 {offsets = [0, 96], sizes = [2, 32], strides = [1, 1]} : vector<2x128xf32> to vector<2x32xf32>
    %28 = arith.negf %27 : vector<2x32xf32>
    %29 = math.exp %28 : vector<2x32xf32>
    %cst_19 = arith.constant 1.000000e+00 : f32
    %30 = vector.broadcast %cst_19 : f32 to vector<2x32xf32>
    %31 = arith.addf %30, %29 : vector<2x32xf32>
    %32 = arith.divf %30, %31 : vector<2x32xf32>
    %c0_20 = arith.constant 0 : index
    %c0_21 = arith.constant 0 : index
    %c0_22 = arith.constant 0 : index
    %33 = vector.load %arg2[%c0_20, %c0_21, %c0_22] : memref<2x2x32xf32, #tpu.memory_space<vmem>>, vector<1x2x32xf32>
    %34 = vector.shape_cast %33 : vector<1x2x32xf32> to vector<2x32xf32>
    %35 = arith.mulf %24, %34 : vector<2x32xf32>
    %36 = arith.mulf %18, %26 : vector<2x32xf32>
    %37 = arith.addf %35, %36 : vector<2x32xf32>
    %38 = math.tanh %37 : vector<2x32xf32>
    %39 = arith.mulf %32, %38 : vector<2x32xf32>
    %c0_23 = arith.constant 0 : index
    %c0_24 = arith.constant 0 : index
    %c0_25 = arith.constant 0 : index
    %40 = vector.load %arg4[%c0_23, %c0_24, %c0_25] : memref<2x2x32xf32, #tpu.memory_space<vmem>>, vector<1x2x32xf32>
    %41 = vector.shape_cast %40 : vector<1x2x32xf32> to vector<2x32xf32>
    %42 = vector.shape_cast %39 : vector<2x32xf32> to vector<1x2x32xf32>
    tpu.vector_store %arg4[%c0_23, %c0_24, %c0_25], %42 {strides = array<i32>} : memref<2x2x32xf32, #tpu.memory_space<vmem>>, vector<1x2x32xf32>,
    %c0_26 = arith.constant 0 : index
    %c0_27 = arith.constant 0 : index
    %c0_28 = arith.constant 0 : index
    %43 = vector.load %arg5[%c0_26, %c0_27, %c0_28] : memref<2x2x32xf32, #tpu.memory_space<vmem>>, vector<1x2x32xf32>
    %44 = vector.shape_cast %43 : vector<1x2x32xf32> to vector<2x32xf32>
    %45 = vector.shape_cast %37 : vector<2x32xf32> to vector<1x2x32xf32>
    tpu.vector_store %arg5[%c0_26, %c0_27, %c0_28], %45 {strides = array<i32>} : memref<2x2x32xf32, #tpu.memory_space<vmem>>, vector<1x2x32xf32>,
    %c0_29 = arith.constant 0 : index
    %c0_30 = arith.constant 0 : index
    %46 = vector.load %arg6[%c0_29, %c0_30] : memref<2x72xf32, #tpu.memory_space<vmem>>, vector<2x32xf32>
    tpu.vector_store %arg6[%c0_29, %c0_30], %39 {strides = array<i32>} : memref<2x72xf32, #tpu.memory_space<vmem>>, vector<2x32xf32>,
    %c1 = arith.constant 1 : index
    %c0_31 = arith.constant 0 : index
    %c0_32 = arith.constant 0 : index
    %47 = vector.load %arg1[%c1, %c0_31, %c0_32] : memref<2x2x32xf32, #tpu.memory_space<vmem>>, vector<1x2x32xf32>
    %48 = vector.shape_cast %47 : vector<1x2x32xf32> to vector<2x32xf32>
    %c0_33 = arith.constant 0 : index
    %c32_34 = arith.constant 32 : index
    %49 = vector.load %arg6[%c0_33, %c32_34] : memref<2x72xf32, #tpu.memory_space<vmem>>, vector<2x32xf32>
    tpu.vector_store %arg6[%c0_33, %c32_34], %48 {strides = array<i32>} : memref<2x72xf32, #tpu.memory_space<vmem>>, vector<2x32xf32>,
    %c0_35 = arith.constant 0 : index
    %c0_36 = arith.constant 0 : index
    %50 = vector.load %arg6[%c0_35, %c0_36] : memref<2x72xf32, #tpu.memory_space<vmem>>, vector<2x72xf32>
    %c1_37 = arith.constant 1 : index
    %c0_38 = arith.constant 0 : index
    %c0_39 = arith.constant 0 : index
    %51 = vector.load %arg3[%c1_37, %c0_38, %c0_39] : memref<2x72x128xf32, #tpu.memory_space<vmem>>, vector<1x72x128xf32>
    %52 = vector.shape_cast %51 : vector<1x72x128xf32> to vector<72x128xf32>
    %cst_40 = arith.constant dense<0.000000e+00> : vector<2x128xf32>
    %53 = tpu.matmul %50, %52, %cst_40 {dimension_numbers = #tpu.dot_dimension_numbers<[1], [0], [0], [1], [0, 0, 1, 1], [], []>} : vector<2x72xf32>, vector<72x128xf32>, vector<2x128xf32> -> vector<2x128xf32>
    %54 = vector.extract_strided_slice %53 {offsets = [0, 0], sizes = [2, 32], strides = [1, 1]} : vector<2x128xf32> to vector<2x32xf32>
    %55 = arith.negf %54 : vector<2x32xf32>
    %56 = math.exp %55 : vector<2x32xf32>
    %cst_41 = arith.constant 1.000000e+00 : f32
    %57 = vector.broadcast %cst_41 : f32 to vector<2x32xf32>
    %58 = arith.addf %57, %56 : vector<2x32xf32>
    %59 = arith.divf %57, %58 : vector<2x32xf32>
    %60 = vector.extract_strided_slice %53 {offsets = [0, 32], sizes = [2, 32], strides = [1, 1]} : vector<2x128xf32> to vector<2x32xf32>
    %61 = arith.negf %60 : vector<2x32xf32>
    %62 = math.exp %61 : vector<2x32xf32>
    %cst_42 = arith.constant 1.000000e+00 : f32
    %63 = vector.broadcast %cst_42 : f32 to vector<2x32xf32>
    %64 = arith.addf %63, %62 : vector<2x32xf32>
    %65 = arith.divf %63, %64 : vector<2x32xf32>
    %66 = vector.extract_strided_slice %53 {offsets = [0, 64], sizes = [2, 32], strides = [1, 1]} : vector<2x128xf32> to vector<2x32xf32>
    %67 = math.tanh %66 : vector<2x32xf32>
    %68 = vector.extract_strided_slice %53 {offsets = [0, 96], sizes = [2, 32], strides = [1, 1]} : vector<2x128xf32> to vector<2x32xf32>
    %69 = arith.negf %68 : vector<2x32xf32>
    %70 = math.exp %69 : vector<2x32xf32>
    %cst_43 = arith.constant 1.000000e+00 : f32
    %71 = vector.broadcast %cst_43 : f32 to vector<2x32xf32>
    %72 = arith.addf %71, %70 : vector<2x32xf32>
    %73 = arith.divf %71, %72 : vector<2x32xf32>
    %c1_44 = arith.constant 1 : index
    %c0_45 = arith.constant 0 : index
    %c0_46 = arith.constant 0 : index
    %74 = vector.load %arg2[%c1_44, %c0_45, %c0_46] : memref<2x2x32xf32, #tpu.memory_space<vmem>>, vector<1x2x32xf32>
    %75 = vector.shape_cast %74 : vector<1x2x32xf32> to vector<2x32xf32>
    %76 = arith.mulf %65, %75 : vector<2x32xf32>
    %77 = arith.mulf %59, %67 : vector<2x32xf32>
    %78 = arith.addf %76, %77 : vector<2x32xf32>
    %79 = math.tanh %78 : vector<2x32xf32>
    %80 = arith.mulf %73, %79 : vector<2x32xf32>
    %c1_47 = arith.constant 1 : index
    %c0_48 = arith.constant 0 : index
    %c0_49 = arith.constant 0 : index
    %81 = vector.load %arg4[%c1_47, %c0_48, %c0_49] : memref<2x2x32xf32, #tpu.memory_space<vmem>>, vector<1x2x32xf32>
    %82 = vector.shape_cast %81 : vector<1x2x32xf32> to vector<2x32xf32>
    %83 = vector.shape_cast %80 : vector<2x32xf32> to vector<1x2x32xf32>
    tpu.vector_store %arg4[%c1_47, %c0_48, %c0_49], %83 {strides = array<i32>} : memref<2x2x32xf32, #tpu.memory_space<vmem>>, vector<1x2x32xf32>,
    %c1_50 = arith.constant 1 : index
    %c0_51 = arith.constant 0 : index
    %c0_52 = arith.constant 0 : index
    %84 = vector.load %arg5[%c1_50, %c0_51, %c0_52] : memref<2x2x32xf32, #tpu.memory_space<vmem>>, vector<1x2x32xf32>
    %85 = vector.shape_cast %84 : vector<1x2x32xf32> to vector<2x32xf32>
    %86 = vector.shape_cast %78 : vector<2x32xf32> to vector<1x2x32xf32>
    tpu.vector_store %arg5[%c1_50, %c0_51, %c0_52], %86 {strides = array<i32>} : memref<2x2x32xf32, #tpu.memory_space<vmem>>, vector<1x2x32xf32>,
    return
  }
}

</mosaic_0001>

<llo_original>
// kernel: lstm_controller_forward.1
$region0: #{lstm_controller_forward.1}
  #allocation0 [shape = 'u32[]', space=smem, size = 0x4, offset = 0x4, fixed_abs, tag = 'smem constant byte address 0x4 - core index']
  #allocation1 [shape = 'u32[72,128]{1,0:T(1,128)}', space=vmem, size = 0x9000, scoped, tag = 'internal scratch']
  #allocation2 [shape = 'f32[2,72]{1,0:T(2,128)}', space=vmem, size = 0x400, scoped, tag = 'scratch operand']
  %s0 = inlined_call_operand.vmem [shape: f32[2,32], index: 0, kind: input, shape index: {}]
  %s1 = inlined_call_operand.vmem [shape: f32[2,2,32], index: 1, kind: input, shape index: {}, may-alias: {1,4}]
  %s2 = inlined_call_operand.vmem [shape: f32[2,2,32], index: 2, kind: input, shape index: {}, may-alias: {2,5}]
  %s3 = inlined_call_operand.hbm [shape: f32[2,72,128], index: 3, kind: input, shape index: {}]
  %s4 = inlined_call_operand.vmem [shape: f32[2,2,32], index: 4, kind: output, shape index: {0}, may-alias: {1,4}]
  %s5 = inlined_call_operand.vmem [shape: f32[2,2,32], index: 5, kind: output, shape index: {1}, may-alias: {2,5}]
  %6 = xla_tuple %s4, %s5
  %s7 = sld [smem:[#allocation0]]
  $region38: #{lstm_controller_forward.1} parent=0
    _
  %s9 = ssub.s32 1, %s7
  %s10 = scalar_select 0, %s9, %s7
  $region1: #{lstm_controller_forward.1} parent=0
    #allocation3 [shape = 'u8[73728]{0}', space=vmem, size = 0x12000, scoped, tag = 'input window, operand 3, single buffered']
    #allocation4 [shape = 's32[1]{0}', space=sflag, size = 0x4, scoped, tag = 'scoped memory for lstm_controller_forward.1']
    %11 = vsyncpa [#allocation4], 0
    // Predicated region
    $region2: #{lstm_controller_forward.1} parent=1 // pred_check
      _
    $region3: #{lstm_controller_forward.1} parent=1 // pred_check_branch
      %13 = sbr.rel (0) target = $region5
    $region4: #{lstm_controller_forward.1} parent=1 // pred_region
      _
    $region5: #{lstm_controller_forward.1} parent=1 // pred_fallthru
      _
    // Predicated region
    $region6: #{lstm_controller_forward.1} parent=1 // pred_check
      _
    $region7: #{lstm_controller_forward.1} parent=1 // pred_check_branch
      %15 = sbr.rel (0) target = $region9
    $region8: #{lstm_controller_forward.1} parent=1 // pred_region
      _
    $region9: #{lstm_controller_forward.1} parent=1 // pred_fallthru
      _
    // Predicated region
    $region10: #{lstm_controller_forward.1} parent=1 // pred_check
      _
    $region11: #{lstm_controller_forward.1} parent=1 // pred_check_branch
      %17 = sbr.rel (0) target = $region13
    $region12: #{lstm_controller_forward.1} parent=1 // pred_region
      _
    $region13: #{lstm_controller_forward.1} parent=1 // pred_fallthru
      _
    // Predicated region
    $region14: #{lstm_controller_forward.1} parent=1 // pred_check
      _
    $region15: #{lstm_controller_forward.1} parent=1 // pred_check_branch
      %19 = sbr.rel (0) target = $region17
    $region16: #{lstm_controller_forward.1} parent=1 // pred_region
      %21 = vsyncadd [#allocation4], 0
      %s22 = sshll.u32 %s3, 4
      %s23 = int_to_ptr.hbm [resolvable:$true] %s22
      %s24 = sshll.u32 [#allocation3], 4
      %s25 = int_to_ptr.vmem [resolvable:$true] %s24
      %30 = dma.hbm_to_vmem [thread:$0]  %s23, 2304, %s25, [#allocation4], 128, 128, 8
    $region17: #{lstm_controller_forward.1} parent=1 // pred_fallthru
      _
    // Predicated region
    $region18: #{lstm_controller_forward.1} parent=1 // pred_check
      _
    $region19: #{lstm_controller_forward.1} parent=1 // pred_check_branch
      %32 = sbr.rel (0) target = $region21
    $region20: #{lstm_controller_forward.1} parent=1 // pred_region
      %34 = dma.done [#allocation4], 2304
    $region21: #{lstm_controller_forward.1} parent=1 // pred_fallthru
      _
    %vm35 = vcmask 582656
    %36 = vst.msk [vmem:[#allocation2] sm:$0x3] %vm35, 0.0
    %vm37 = vcmask 525824
    %38 = vst.msk [vmem:[#allocation2] sm:$0x3] %vm37, 1.0
    %v39 = vld [vmem:[%s0] sm:$0x3]
    %vm40 = vcmask 254976
    %41 = vst.msk [vmem:[#allocation2] sm:$0x3] %vm40, %v39
    %v42 = vld [vmem:[%s1] sm:$0x3]
    %44 = vrot.lane.b32.xlu0 %v42, 32
    %v45 = vpop.permute.xlu0 %44
    %vm47 = vcmask 517376
    %48 = vst.msk [vmem:[#allocation2] sm:$0x3] %vm47, %v45
    %v49 = vld [vmem:[#allocation2] sm:$0x3]
    %v50 = vld [vmem:[#allocation3] sm:$0xff]
    %v51 = vld [vmem:[#allocation3 + $0x8] sm:$0xff]
    %v52 = vld [vmem:[#allocation3 + $0x10] sm:$0xff]
    %v53 = vld [vmem:[#allocation3 + $0x18] sm:$0xff]
    %v54 = vld [vmem:[#allocation3 + $0x20] sm:$0xff]
    %v55 = vld [vmem:[#allocation3 + $0x28] sm:$0xff]
    %v56 = vld [vmem:[#allocation3 + $0x30] sm:$0xff]
    %v57 = vld [vmem:[#allocation3 + $0x38] sm:$0xff]
    %v58 = vld [vmem:[#allocation3 + $0x40] sm:$0xff]
    %vm59 = vcmask 588800
    %v61 = vsel %vm59, %v49, 0
    %63 = vmatpush.msra.mxu0 0.0
    %64 = vmatpush.msra.mxu0 0.0
    %65 = vmatpush.msra.mxu0 0.0
    %66 = vmatpush.msra.mxu0 0.0
    %67 = vmatpush.msra.mxu0 0.0
    %68 = vmatpush.msra.mxu0 0.0
    %69 = vmatpush.msra.mxu0 0.0
    %70 = vmatpush.msra.mxu0 %v58
    %71 = vmatpush.msra.mxu0 %v57
    %72 = vmatpush.msra.mxu0 %v56
    %73 = vmatpush.msra.mxu0 %v55
    %74 = vmatpush.msra.mxu0 %v54
    %75 = vmatpush.msra.mxu0 %v53
    %76 = vmatpush.msra.mxu0 %v52
    %77 = vmatpush.msra.mxu0 %v51
    %78 = vmatpush.msra.mxu0 %v50
    %79 = vmatmul.f32.gmra.mxu0 %v61
    %v80 = vpop.f32.mrf.mxu0
    %v81 = vadd.f32 0.0, %v80
    %82 = vdwg.mxu0
    %v83 = vxor.u32 %v81, 2147483648
    %v84 = vmul.f32 %v83, 1.442695
    %v85 = vpow.pop %v84
    %v86 = vadd.f32 %v85, 1.0
    %v87 = vrcp.pop %v86
    %v88 = vmul.f32 %v86, %v87
    %v89 = vsub.f32 1.0, %v88
    %v90 = vmul.f32 %v87, %v89
    %v91 = vadd.f32 %v87, %v90
    %vm92 = vweird.f32 %v86
    %vm93 = vweird.f32 %v87
    %vm94 = vmor %vm92, %vm93
    %v95 = vsel %vm94, %v87, %v91
    %v96 = vand.u32 2147483647, %v86
    %vm97 = vcmp.eq.f32.partialorder %v96, 8.507059e+37
    %v98 = vand.u32 %v86, 2147483648
    %v99 = vor.u32 1.1754944e-38, %v98
    %v100 = vsel %vm97, %v99, %v95
    %v101 = vmul.f32 1.0, %v100
    %v102 = vtanh.pop %v81
    %v103 = vld [vmem:[%s2] sm:$0x3]
    %105 = vrot.lane.b32.xlu0 %v103, 32
    %v106 = vpop.permute.xlu0 %105
    %v108 = vmul.f32 %v101, %v106
    %110 = vrot.lane.b32.xlu0 %v102, 64
    %v111 = vpop.permute.xlu0 %110
    %v113 = vmul.f32 %v101, %v111
    %115 = vrot.lane.b32.xlu0 %v113, 32
    %v116 = vpop.permute.xlu0 %115
    %v118 = vadd.f32 %v108, %v116
    %v119 = vtanh.pop %v118
    %121 = vrot.lane.b32.xlu0 %v119, 64
    %v122 = vpop.permute.xlu0 %121
    %v124 = vmul.f32 %v101, %v122
    %126 = vrot.lane.b32.xlu0 %v124, 32
    %v127 = vpop.permute.xlu0 %126
    %129 = vst.msk [vmem:[%s4] sm:$0x3] %vm40, %v127
    %131 = vrot.lane.b32.xlu0 %v118, 96
    %v132 = vpop.permute.xlu0 %131
    %134 = vst.msk [vmem:[%s5] sm:$0x3] %vm40, %v132
    %135 = vst.msk [vmem:[#allocation2] sm:$0x3] %vm40, %v127
    %s136 = scalar_lea.vmem %s1, 2
    %v137 = vld [vmem:[%s136] sm:$0x3]
    %139 = vrot.lane.b32.xlu0 %v137, 32
    %v140 = vpop.permute.xlu0 %139
    %142 = vst.msk [vmem:[#allocation2] sm:$0x3] %vm47, %v140
    %v143 = vld [vmem:[#allocation2] sm:$0x3]
    %s144 = scalar_lea.vmem [#allocation3], 72
    %v145 = vld [vmem:[%s144] sm:$0xff]
    %v146 = vld [vmem:[%s144 + $0x8] sm:$0xff]
    %v147 = vld [vmem:[%s144 + $0x10] sm:$0xff]
    %v148 = vld [vmem:[%s144 + $0x18] sm:$0xff]
    %v149 = vld [vmem:[%s144 + $0x20] sm:$0xff]
    %v150 = vld [vmem:[%s144 + $0x28] sm:$0xff]
    %v151 = vld [vmem:[%s144 + $0x30] sm:$0xff]
    %v152 = vld [vmem:[%s144 + $0x38] sm:$0xff]
    %v153 = vld [vmem:[%s144 + $0x40] sm:$0xff]
    %v155 = vsel %vm59, %v143, 0
    %157 = vmatpush.msra.mxu0 0.0
    %158 = vmatpush.msra.mxu0 0.0
    %159 = vmatpush.msra.mxu0 0.0
    %160 = vmatpush.msra.mxu0 0.0
    %161 = vmatpush.msra.mxu0 0.0
    %162 = vmatpush.msra.mxu0 0.0
    %163 = vmatpush.msra.mxu0 0.0
    %164 = vmatpush.msra.mxu0 %v153
    %165 = vmatpush.msra.mxu0 %v152
    %166 = vmatpush.msra.mxu0 %v151
    %167 = vmatpush.msra.mxu0 %v150
    %168 = vmatpush.msra.mxu0 %v149
    %169 = vmatpush.msra.mxu0 %v148
    %170 = vmatpush.msra.mxu0 %v147
    %171 = vmatpush.msra.mxu0 %v146
    %172 = vmatpush.msra.mxu0 %v145
    %173 = vmatmul.f32.gmra.mxu0 %v155
    %v174 = vpop.f32.mrf.mxu0
    %v175 = vadd.f32 0.0, %v174
    %176 = vdwg.mxu0
    %v177 = vxor.u32 %v175, 2147483648
    %v178 = vmul.f32 %v177, 1.442695
    %v179 = vpow.pop %v178
    %v180 = vadd.f32 %v179, 1.0
    %v181 = vrcp.pop %v180
    %v182 = vmul.f32 %v180, %v181
    %v183 = vsub.f32 1.0, %v182
    %v184 = vmul.f32 %v181, %v183
    %v185 = vadd.f32 %v181, %v184
    %vm186 = vweird.f32 %v180
    %vm187 = vweird.f32 %v181
    %vm188 = vmor %vm186, %vm187
    %v189 = vsel %vm188, %v181, %v185
    %v190 = vand.u32 2147483647, %v180
    %vm191 = vcmp.eq.f32.partialorder %v190, 8.507059e+37
    %v192 = vand.u32 %v180, 2147483648
    %v193 = vor.u32 1.1754944e-38, %v192
    %v194 = vsel %vm191, %v193, %v189
    %v195 = vmul.f32 1.0, %v194
    %v196 = vtanh.pop %v175
    %s197 = scalar_lea.vmem %s2, 2
    %v198 = vld [vmem:[%s197] sm:$0x3]
    %200 = vrot.lane.b32.xlu0 %v198, 32
    %v201 = vpop.permute.xlu0 %200
    %v203 = vmul.f32 %v195, %v201
    %205 = vrot.lane.b32.xlu0 %v196, 64
    %v206 = vpop.permute.xlu0 %205
    %v208 = vmul.f32 %v195, %v206
    %210 = vrot.lane.b32.xlu0 %v208, 32
    %v211 = vpop.permute.xlu0 %210
    %v213 = vadd.f32 %v203, %v211
    %v214 = vtanh.pop %v213
    %216 = vrot.lane.b32.xlu0 %v214, 64
    %v217 = vpop.permute.xlu0 %216
    %v219 = vmul.f32 %v195, %v217
    %221 = vrot.lane.b32.xlu0 %v219, 32
    %v222 = vpop.permute.xlu0 %221
    %s224 = scalar_lea.vmem %s4, 2
    %225 = vst.msk [vmem:[%s224] sm:$0x3] %vm40, %v222
    %227 = vrot.lane.b32.xlu0 %v213, 96
    %v228 = vpop.permute.xlu0 %227
    %s230 = scalar_lea.vmem %s5, 2
    %231 = vst.msk [vmem:[%s230] sm:$0x3] %vm40, %v228
    // Predicated region
    $region22: #{lstm_controller_forward.1} parent=1 // pred_check
      _
    $region23: #{lstm_controller_forward.1} parent=1 // pred_check_branch
      %233 = sbr.rel (0) target = $region25
    $region24: #{lstm_controller_forward.1} parent=1 // pred_region
      _
    $region25: #{lstm_controller_forward.1} parent=1 // pred_fallthru
      _
    // Predicated region
    $region26: #{lstm_controller_forward.1} parent=1 // pred_check
      _
    $region27: #{lstm_controller_forward.1} parent=1 // pred_check_branch
      %235 = sbr.rel (0) target = $region29
    $region28: #{lstm_controller_forward.1} parent=1 // pred_region
      _
    $region29: #{lstm_controller_forward.1} parent=1 // pred_fallthru
      _
    // Predicated region
    $region30: #{lstm_controller_forward.1} parent=1 // pred_check
      _
    $region31: #{lstm_controller_forward.1} parent=1 // pred_check_branch
      %237 = sbr.rel (0) target = $region33
    $region32: #{lstm_controller_forward.1} parent=1 // pred_region
      _
    $region33: #{lstm_controller_forward.1} parent=1 // pred_fallthru
      _
    // Predicated region
    $region34: #{lstm_controller_forward.1} parent=1 // pred_check
      _
    $region35: #{lstm_controller_forward.1} parent=1 // pred_check_branch
      %239 = sbr.rel (0) target = $region37
    $region36: #{lstm_controller_forward.1} parent=1 // pred_region
      _
    $region37: #{lstm_controller_forward.1} parent=1 // pred_fallthru
      _
    %240 = vsyncpa [#allocation4], 1

</llo_original>
